<compile_context>
chip_gen: v6e
topology: v6e:2x2x1
jax: 0.10.0
libtpu: 0.0.40
codegen_flags: <defaults>
</compile_context>

<pallas_src>
import functools

import jax
import jax.numpy as jnp
from jax.experimental import pallas as pl
from jax.experimental.pallas import tpu as pltpu


# ----------------------------------------------------------------------------
# Generic Pallas matmul with fused (optional log|.|) + affine epilogue.
# Single K block, single N block, 1-D grid over M.
# ----------------------------------------------------------------------------
def _mm_affine_kernel(a_ref, b_ref, o_ref, *, alpha, beta, log_abs):
    acc = jnp.dot(a_ref[...], b_ref[...], preferred_element_type=jnp.float32)
    if log_abs:
        acc = jnp.log(jnp.abs(acc) + 1e-5)
    if alpha != 1.0:
        acc = acc * alpha
    if beta != 0.0:
        acc = acc + beta
    o_ref[...] = acc.astype(o_ref.dtype)


def pallas_matmul_affine(a, b, *, alpha=1.0, beta=0.0, log_abs=False, tm=1024):
    """out = (log(|a@b|+1e-5) if log_abs else a@b) * alpha + beta  (f32 out).

    a: (M, K), b: (K, N).  K and N are taken whole (no padding, no reduction
    grid axis); M is tiled with tm (ragged last block handled by Pallas).
    `b` is cast to a's dtype and stays resident in VMEM across the M grid.
    bf16 inputs accumulate in f32.
    """
    M, K = a.shape
    K2, N = b.shape
    assert K == K2, (a.shape, b.shape)
    b = b.astype(a.dtype)

    tm = max(8, (int(tm) // 8) * 8)          # sublane-aligned tile
    tm_eff = M if M <= tm else tm            # single full-M block when small
    grid_m = pl.cdiv(M, tm_eff)

    kernel = functools.partial(_mm_affine_kernel, alpha=float(alpha),
                               beta=float(beta), log_abs=bool(log_abs))
    return pl.pallas_call(
        kernel,
        out_shape=jax.ShapeDtypeStruct((M, N), jnp.float32),
        grid_spec=pltpu.PrefetchScalarGridSpec(
            num_scalar_prefetch=0,
            grid=(grid_m,),
            in_specs=[pl.BlockSpec((tm_eff, K), lambda i: (i, 0)),
                      pl.BlockSpec((K, N), lambda i: (0, 0))],   # weight resident
            out_specs=pl.BlockSpec((tm_eff, N), lambda i: (i, 0))),
        compiler_params=pltpu.CompilerParams(
            dimension_semantics=("parallel",)),
    )(a, b)


# ----------------------------------------------------------------------------
# MusicDCAE pipeline
# ----------------------------------------------------------------------------
class MusicDCAEPallas:
    N_MELS = 16          # (small synthetic config; real model uses 128)
    LATENT_C = 8
    AUDIO_C = 2          # stereo
    HOP = 512            # samples per mel frame at 44.1 kHz

    def __init__(self, source_sample_rate=None):
        self.source_sample_rate = 48000 if source_sample_rate is None else source_sample_rate
        self.min_mel_value = -11.0
        self.max_mel_value = 3.0
        self.audio_chunk_size = int(round(1024 * 512 / 44100 * 48000))
        self.mel_chunk_size = 1024
        self.time_dimention_multiple = 8
        self.latent_chunk_size = self.mel_chunk_size // self.time_dimention_multiple
        self.scale_factor = 0.1786
        self.shift_factor = -1.9091

        # Deterministic synthetic parameters (stand-ins for DCAE / vocoder weights).
        key = jax.random.PRNGKey(42)
        k1, k2, k3, k4 = jax.random.split(key, 4)
        C, NM, L, H = self.AUDIO_C, self.N_MELS, self.LATENT_C, self.HOP
        P = self.time_dimention_multiple                         # 8x8 patchify
        # bf16 weights for the MXU-native paths; decoder stays f32 (K=8, tiny).
        self.W_mel = (jax.random.normal(k1, (H, NM), jnp.float32)
                      / jnp.sqrt(H * 1.0)).astype(jnp.bfloat16)
        self.W_enc = (jax.random.normal(k2, (C * P * P, L), jnp.float32)
                      / jnp.sqrt(C * P * P * 1.0)).astype(jnp.bfloat16)
        self.W_dec = jax.random.normal(k3, (L, C * P * P), jnp.float32) / jnp.sqrt(L * 1.0)
        self.W_voc = (jax.random.normal(k4, (NM, H), jnp.float32)
                      / jnp.sqrt(NM * 1.0)).astype(jnp.bfloat16)

    # --- helpers -------------------------------------------------------------
    @staticmethod
    def _resample_linear(audios, sr_in, sr_out):
        # TODO(synk): torchaudio.functional.resample uses windowed-sinc; linear
        # interpolation is used here as the closest clean JAX equivalent.
        B, C, S = audios.shape
        new_len = int(S * sr_out / sr_in)
        pos = jnp.arange(new_len, dtype=jnp.float32) * (sr_in / sr_out)
        xp = jnp.arange(S, dtype=jnp.float32)
        flat = audios.reshape(B * C, S)
        out = jax.vmap(lambda y: jnp.interp(pos, xp, y))(flat)
        return out.reshape(B, C, new_len)

    def forward_mel(self, audios):
        """vocoder.mel_transform surrogate: frames -> filterbank matmul -> log.

        Mel min/max normalization and transforms.Normalize(0.5, 0.5) are fused
        into the Pallas epilogue:
            n = ((mel - min)/(max-min) - 0.5)/0.5 = mel*alpha + beta
        """
        B, C, S = audios.shape
        T = S // self.HOP
        frames = audios.reshape(B * C * T, self.HOP)      # free contiguous reshape
        rng = self.max_mel_value - self.min_mel_value
        alpha = (1.0 / rng) / 0.5
        beta = (-self.min_mel_value / rng - 0.5) / 0.5
        mel = pallas_matmul_affine(frames, self.W_mel,
                                   alpha=alpha, beta=beta, log_abs=True, tm=1024)
        # (B*C*T, NM) -> (B, C, NM, T); mel is HOP/NM = 32x smaller than audio,
        # so this transpose is cheap relative to the frame matmul.
        mel = mel.reshape(B, C, T, self.N_MELS).transpose(0, 1, 3, 2)
        return mel

    # --- encode --------------------------------------------------------------
    def encode(self, audios, audio_lengths=None, sr=None):
        B, C, S = audios.shape
        if audio_lengths is None:
            audio_lengths = jnp.full((B,), S, dtype=jnp.int32)
        if sr is None:
            sr = self.source_sample_rate
        if sr != 44100:
            audios = self._resample_linear(audios, sr, 44100)

        max_audio_len = audios.shape[-1]
        chunk = 8 * 512
        if max_audio_len % chunk != 0:
            pad = chunk - max_audio_len % chunk
            audios = jnp.pad(audios, ((0, 0), (0, 0), (0, pad)))
        # bf16 feed for the large frames operand (cast fuses with the pad);
        # accumulation in the kernel stays f32.
        audios = audios.astype(jnp.bfloat16)

        # mel transform + normalization + Normalize(0.5, 0.5) (fused in kernel)
        mels = self.forward_mel(audios)                              # (B,C,NM,T)

        # DCAE encoder surrogate: 8x8 patchify conv as matmul, fused with
        # (latent - shift_factor) * scale_factor.
        P = self.time_dimention_multiple
        Bm, Cm, NM, T = mels.shape
        Hp, Wp = NM // P, T // P
        x = mels.reshape(Bm, Cm, Hp, P, Wp, P).transpose(0, 2, 4, 1, 3, 5)
        x = x.reshape(Bm * Hp * Wp, Cm * P * P).astype(jnp.bfloat16)
        alpha = self.scale_factor
        beta = -self.shift_factor * self.scale_factor
        lat = pallas_matmul_affine(x, self.W_enc, alpha=alpha, beta=beta)
        latents = lat.reshape(Bm, Hp, Wp, self.LATENT_C).transpose(0, 3, 1, 2)

        audio_lengths_44k = jnp.ceil(audio_lengths.astype(jnp.float32) * 44100.0 / sr)
        latent_lengths = jnp.ceil(audio_lengths_44k / 512.0 / 8.0).astype(jnp.int32)
        return latents, latent_lengths

    # --- decode --------------------------------------------------------------
    def decode(self, latents, audio_lengths=None, sr=None):
        latents = latents / self.scale_factor + self.shift_factor
        B, L, Hp, Wp = latents.shape
        C, P, NM = self.AUDIO_C, self.time_dimention_multiple, self.N_MELS

        # DCAE decoder surrogate, fused with  mels*0.5+0.5  and
        # mels*(max-min)+min  -> alpha = 0.5*(max-min), beta = 0.5*(max-min)+min
        rng = self.max_mel_value - self.min_mel_value
        alpha = 0.5 * rng
        beta = 0.5 * rng + self.min_mel_value
        x = latents.transpose(0, 2, 3, 1).reshape(B * Hp * Wp, L)     # tiny, f32
        y = pallas_matmul_affine(x, self.W_dec, alpha=alpha, beta=beta)
        y = y.reshape(B, Hp, Wp, C, P, P).transpose(0, 3, 1, 4, 2, 5)
        mels = y.reshape(B, C, Hp * P, Wp * P)                        # (B,C,NM,T)

        # vocoder.decode surrogate: per-frame mel -> 512 samples, lane-dense out.
        T = mels.shape[-1]
        f = mels.transpose(0, 1, 3, 2).reshape(B * C * T, NM).astype(jnp.bfloat16)
        wav = pallas_matmul_affine(f, self.W_voc, tm=1024)            # (B*C*T, 512)
        pred_wavs = wav.reshape(B, C, T * self.HOP)                   # free reshape

        if sr is not None and sr != 44100:
            pred_wavs = self._resample_linear(pred_wavs, 44100, sr)
        else:
            sr = 44100

        if audio_lengths is not None:
            # TODO(synk): torch slices each wav to its own length and stacks;
            # with traced/ragged lengths that cannot stack, so zero-mask past
            # each length instead (no host sync, jit-safe).
            lengths = jnp.asarray(audio_lengths)
            idx = jnp.arange(pred_wavs.shape[-1])
            mask = idx[None, None, :] < lengths[:, None, None]
            pred_wavs = jnp.where(mask, pred_wavs, 0.0)
        return sr, pred_wavs

    # --- forward -------------------------------------------------------------
    def forward(self, audios, audio_lengths=None, sr=None):
        latents, latent_lengths = self.encode(audios=audios,
                                              audio_lengths=audio_lengths, sr=sr)
        out_sr, pred_wavs = self.decode(latents=latents,
                                        audio_lengths=audio_lengths, sr=sr)
        return out_sr, pred_wavs, latents, latent_lengths


# ----------------------------------------------------------------------------
if __name__ == "__main__":
    key = jax.random.PRNGKey(0)
    # small stereo batch; 5000 samples @ 48 kHz exercises resample + pad paths
    audios = jax.random.normal(key, (2, 2, 5000), dtype=jnp.float32)

    model = MusicDCAEPallas()
    sr, pred_wavs, latents, latent_lengths = model.forward(audios)

    jax.block_until_ready(pred_wavs)
    jax.block_until_ready(latents)
    jax.block_until_ready(latent_lengths)

    assert pred_wavs.ndim == 3 and pred_wavs.shape[:2] == (2, 2)
    assert latents.shape == (2, MusicDCAEPallas.LATENT_C, 2, 2)
    assert sr == 44100
    print("KERNEL_OK")
</pallas_src>

<mosaic_0001>
module attributes {stable_mosaic.version = 11 : i64} {
  func.func @_mm_affine_kernel(%arg0: i32, %arg1: memref<64x512xbf16, #tpu.memory_space<vmem>>, %arg2: memref<512x16xbf16, #tpu.memory_space<vmem>>, %arg3: memref<64x16xf32, #tpu.memory_space<vmem>>) attributes {dimension_semantics = [#tpu.dimension_semantics<parallel>], iteration_bounds = array<i64: 1>, scalar_prefetch = 0 : i64, scratch_operands = 0 : i64, tpu.core_type = #tpu.core_type<tc>, window_params = [{transform_indices = @transform_0, window_bounds = array<i64: 64, 512>}, {pipeline_mode = #tpu.pipeline_mode<synchronous>, transform_indices = @transform_1, window_bounds = array<i64: 512, 16>}, {transform_indices = @transform_2, window_bounds = array<i64: 64, 16>}]} {
    %c0 = arith.constant 0 : index
    %c0_0 = arith.constant 0 : index
    %0 = vector.load %arg1[%c0, %c0_0] : memref<64x512xbf16, #tpu.memory_space<vmem>>, vector<64x512xbf16>
    %c0_1 = arith.constant 0 : index
    %c0_2 = arith.constant 0 : index
    %1 = vector.load %arg2[%c0_1, %c0_2] : memref<512x16xbf16, #tpu.memory_space<vmem>>, vector<512x16xbf16>
    %cst = arith.constant dense<0.000000e+00> : vector<64x16xf32>
    %2 = tpu.matmul %0, %1, %cst {dimension_numbers = #tpu.dot_dimension_numbers<[1], [0], [0], [1], [0, 0, 1, 1], [], []>} : vector<64x512xbf16>, vector<512x16xbf16>, vector<64x16xf32> -> vector<64x16xf32>
    %3 = math.absf %2 : vector<64x16xf32>
    %cst_3 = arith.constant 9.99999974E-6 : f32
    %4 = vector.broadcast %cst_3 : f32 to vector<64x16xf32>
    %5 = arith.addf %3, %4 : vector<64x16xf32>
    %6 = math.log %5 : vector<64x16xf32>
    %cst_4 = arith.constant 0.142857149 : f32
    %7 = vector.broadcast %cst_4 : f32 to vector<64x16xf32>
    %8 = arith.mulf %6, %7 : vector<64x16xf32>
    %cst_5 = arith.constant 0.571428597 : f32
    %9 = vector.broadcast %cst_5 : f32 to vector<64x16xf32>
    %10 = arith.addf %8, %9 : vector<64x16xf32>
    %c0_6 = arith.constant 0 : index
    %c0_7 = arith.constant 0 : index
    %11 = vector.load %arg3[%c0_6, %c0_7] : memref<64x16xf32, #tpu.memory_space<vmem>>, vector<64x16xf32>
    tpu.vector_store %arg3[%c0_6, %c0_7], %10 {strides = array<i32>} : memref<64x16xf32, #tpu.memory_space<vmem>>, vector<64x16xf32>,
    return
  }
  func.func @transform_0(%arg0: i32) -> (i32, i32) {
    %c0_i32 = arith.constant 0 : i32
    %c0_i32_0 = arith.constant 0 : i32
    return %arg0, %c0_i32 : i32, i32
  }
  func.func @transform_1(%arg0: i32) -> (i32, i32) {
    %c0_i32 = arith.constant 0 : i32
    %c0_i32_0 = arith.constant 0 : i32
    %c0_i32_1 = arith.constant 0 : i32
    return %c0_i32, %c0_i32_0 : i32, i32
  }
  func.func @transform_2(%arg0: i32) -> (i32, i32) {
    %c0_i32 = arith.constant 0 : i32
    %c0_i32_0 = arith.constant 0 : i32
    return %arg0, %c0_i32 : i32, i32
  }
}

</mosaic_0001>

<llo_original>
// kernel: tpu_custom_call.1
$region0: #{tpu_custom_call.1}
  #allocation0 [shape = 'u32[]', space=smem, size = 0x4, offset = 0x4, fixed_abs, tag = 'smem constant byte address 0x4 - core index']
  #allocation1 [shape = 'u32[144,128]{1,0:T(1,128)}', space=vmem, size = 0x12000, scoped, tag = 'internal scratch']
  %s0 = inlined_call_operand.vmem [shape: bf16[64,512], index: 0, kind: input, shape index: {}]
  %s1 = inlined_call_operand.vmem [shape: bf16[512,16], index: 1, kind: input, shape index: {}]
  %s2 = inlined_call_operand.vmem [shape: f32[64,16], index: 2, kind: output, shape index: {}]
  %s3 = sld [smem:[#allocation0]]
  $region18: #{tpu_custom_call.1} parent=0
    _
  %s5 = ssub.s32 1, %s3
  %s6 = scalar_select 0, %s5, %s3
  // Predicated region
  $region2: #{tpu_custom_call.1} parent=0 // pred_check
    _
  $region3: #{tpu_custom_call.1} parent=0 // pred_check_branch
    %8 = sbr.rel (0) target = $region5
  $region4: #{tpu_custom_call.1} parent=0 // pred_region
    _
  $region5: #{tpu_custom_call.1} parent=0 // pred_fallthru
    _
  // Predicated region
  $region6: #{tpu_custom_call.1} parent=0 // pred_check
    _
  $region7: #{tpu_custom_call.1} parent=0 // pred_check_branch
    %10 = sbr.rel (0) target = $region9
  $region8: #{tpu_custom_call.1} parent=0 // pred_region
    _
  $region9: #{tpu_custom_call.1} parent=0 // pred_fallthru
    _
  %v12 = vld [vmem:[%s0] sm:$0xff]
  %v13 = vld [vmem:[%s0 + $0x8] sm:$0xff]
  %v14 = vld [vmem:[%s0 + $0x10] sm:$0xff]
  %v15 = vld [vmem:[%s0 + $0x18] sm:$0xff]
  %v16 = vld [vmem:[%s0 + $0x20] sm:$0xff]
  %v17 = vld [vmem:[%s0 + $0x28] sm:$0xff]
  %v18 = vld [vmem:[%s0 + $0x30] sm:$0xff]
  %v19 = vld [vmem:[%s0 + $0x38] sm:$0xff]
  %v20 = vld [vmem:[%s0 + $0x40] sm:$0xff]
  %v21 = vld [vmem:[%s0 + $0x48] sm:$0xff]
  %v22 = vld [vmem:[%s0 + $0x50] sm:$0xff]
  %v23 = vld [vmem:[%s0 + $0x58] sm:$0xff]
  %v24 = vld [vmem:[%s0 + $0x60] sm:$0xff]
  %v25 = vld [vmem:[%s0 + $0x68] sm:$0xff]
  %v26 = vld [vmem:[%s0 + $0x70] sm:$0xff]
  %v27 = vld [vmem:[%s0 + $0x78] sm:$0xff]
  %v28 = vld [vmem:[%s1] sm:$0xf]
  %v29 = vld [vmem:[%s1 + $0x4] sm:$0xf]
  %v30 = vld [vmem:[%s1 + $0x8] sm:$0xf]
  %v31 = vld [vmem:[%s1 + $0xc] sm:$0xf]
  %v32 = vld [vmem:[%s1 + $0x10] sm:$0xf]
  %v33 = vld [vmem:[%s1 + $0x14] sm:$0xf]
  %v34 = vld [vmem:[%s1 + $0x18] sm:$0xf]
  %v35 = vld [vmem:[%s1 + $0x1c] sm:$0xf]
  %v36 = vld [vmem:[%s1 + $0x20] sm:$0xf]
  %v37 = vld [vmem:[%s1 + $0x24] sm:$0xf]
  %v38 = vld [vmem:[%s1 + $0x28] sm:$0xf]
  %v39 = vld [vmem:[%s1 + $0x2c] sm:$0xf]
  %v40 = vld [vmem:[%s1 + $0x30] sm:$0xf]
  %v41 = vld [vmem:[%s1 + $0x34] sm:$0xf]
  %v42 = vld [vmem:[%s1 + $0x38] sm:$0xf]
  %v43 = vld [vmem:[%s1 + $0x3c] sm:$0xf]
  %v44 = vld [vmem:[%s1 + $0x40] sm:$0xf]
  %v45 = vld [vmem:[%s1 + $0x44] sm:$0xf]
  %v46 = vld [vmem:[%s1 + $0x48] sm:$0xf]
  %v47 = vld [vmem:[%s1 + $0x4c] sm:$0xf]
  %v48 = vld [vmem:[%s1 + $0x50] sm:$0xf]
  %v49 = vld [vmem:[%s1 + $0x54] sm:$0xf]
  %v50 = vld [vmem:[%s1 + $0x58] sm:$0xf]
  %v51 = vld [vmem:[%s1 + $0x5c] sm:$0xf]
  %v52 = vld [vmem:[%s1 + $0x60] sm:$0xf]
  %v53 = vld [vmem:[%s1 + $0x64] sm:$0xf]
  %v54 = vld [vmem:[%s1 + $0x68] sm:$0xf]
  %v55 = vld [vmem:[%s1 + $0x6c] sm:$0xf]
  %v56 = vld [vmem:[%s1 + $0x70] sm:$0xf]
  %v57 = vld [vmem:[%s1 + $0x74] sm:$0xf]
  %v58 = vld [vmem:[%s1 + $0x78] sm:$0xf]
  %v59 = vld [vmem:[%s1 + $0x7c] sm:$0xf]
  %v60 = vld [vmem:[%s1 + $0x80] sm:$0xf]
  %v61 = vld [vmem:[%s1 + $0x84] sm:$0xf]
  %v62 = vld [vmem:[%s1 + $0x88] sm:$0xf]
  %v63 = vld [vmem:[%s1 + $0x8c] sm:$0xf]
  %v64 = vld [vmem:[%s1 + $0x90] sm:$0xf]
  %v65 = vld [vmem:[%s1 + $0x94] sm:$0xf]
  %v66 = vld [vmem:[%s1 + $0x98] sm:$0xf]
  %v67 = vld [vmem:[%s1 + $0x9c] sm:$0xf]
  %v68 = vld [vmem:[%s1 + $0xa0] sm:$0xf]
  %v69 = vld [vmem:[%s1 + $0xa4] sm:$0xf]
  %v70 = vld [vmem:[%s1 + $0xa8] sm:$0xf]
  %v71 = vld [vmem:[%s1 + $0xac] sm:$0xf]
  %v72 = vld [vmem:[%s1 + $0xb0] sm:$0xf]
  %v73 = vld [vmem:[%s1 + $0xb4] sm:$0xf]
  %v74 = vld [vmem:[%s1 + $0xb8] sm:$0xf]
  %v75 = vld [vmem:[%s1 + $0xbc] sm:$0xf]
  %v76 = vld [vmem:[%s1 + $0xc0] sm:$0xf]
  %v77 = vld [vmem:[%s1 + $0xc4] sm:$0xf]
  %v78 = vld [vmem:[%s1 + $0xc8] sm:$0xf]
  %v79 = vld [vmem:[%s1 + $0xcc] sm:$0xf]
  %v80 = vld [vmem:[%s1 + $0xd0] sm:$0xf]
  %v81 = vld [vmem:[%s1 + $0xd4] sm:$0xf]
  %v82 = vld [vmem:[%s1 + $0xd8] sm:$0xf]
  %v83 = vld [vmem:[%s1 + $0xdc] sm:$0xf]
  %v84 = vld [vmem:[%s1 + $0xe0] sm:$0xf]
  %v85 = vld [vmem:[%s1 + $0xe4] sm:$0xf]
  %v86 = vld [vmem:[%s1 + $0xe8] sm:$0xf]
  %v87 = vld [vmem:[%s1 + $0xec] sm:$0xf]
  %v88 = vld [vmem:[%s1 + $0xf0] sm:$0xf]
  %v89 = vld [vmem:[%s1 + $0xf4] sm:$0xf]
  %v90 = vld [vmem:[%s1 + $0xf8] sm:$0xf]
  %v91 = vld [vmem:[%s1 + $0xfc] sm:$0xf]
  %v108 = vunpack.c.l.b16 %v12
  %v109 = vunpack.c.h.b16 %v12
  %v110 = vunpack.c.l.b16 %v13
  %v111 = vunpack.c.h.b16 %v13
  %v112 = vunpack.c.l.b16 %v14
  %v113 = vunpack.c.h.b16 %v14
  %v114 = vunpack.c.l.b16 %v15
  %v115 = vunpack.c.h.b16 %v15
  %v116 = vunpack.c.l.b16 %v16
  %v117 = vunpack.c.h.b16 %v16
  %v118 = vunpack.c.l.b16 %v17
  %v119 = vunpack.c.h.b16 %v17
  %v120 = vunpack.c.l.b16 %v18
  %v121 = vunpack.c.h.b16 %v18
  %v122 = vunpack.c.l.b16 %v19
  %v123 = vunpack.c.h.b16 %v19
  %v124 = vunpack.c.l.b16 %v20
  %v125 = vunpack.c.h.b16 %v20
  %v126 = vunpack.c.l.b16 %v21
  %v127 = vunpack.c.h.b16 %v21
  %v128 = vunpack.c.l.b16 %v22
  %v129 = vunpack.c.h.b16 %v22
  %v130 = vunpack.c.l.b16 %v23
  %v131 = vunpack.c.h.b16 %v23
  %v132 = vunpack.c.l.b16 %v24
  %v133 = vunpack.c.h.b16 %v24
  %v134 = vunpack.c.l.b16 %v25
  %v135 = vunpack.c.h.b16 %v25
  %v136 = vunpack.c.l.b16 %v26
  %v137 = vunpack.c.h.b16 %v26
  %v138 = vunpack.c.l.b16 %v27
  %v139 = vunpack.c.h.b16 %v27
  %v140 = vpack.c.b16 %v112, %v108
  %v141 = vpack.c.b16 %v113, %v109
  %v142 = vpack.c.b16 %v114, %v110
  %v143 = vpack.c.b16 %v115, %v111
  %v144 = vpack.c.b16 %v120, %v116
  %v145 = vpack.c.b16 %v121, %v117
  %v146 = vpack.c.b16 %v122, %v118
  %v147 = vpack.c.b16 %v123, %v119
  %v148 = vpack.c.b16 %v128, %v124
  %v149 = vpack.c.b16 %v129, %v125
  %v150 = vpack.c.b16 %v130, %v126
  %v151 = vpack.c.b16 %v131, %v127
  %v152 = vpack.c.b16 %v136, %v132
  %v153 = vpack.c.b16 %v137, %v133
  %v154 = vpack.c.b16 %v138, %v134
  %v155 = vpack.c.b16 %v139, %v135
  %v236 = vunpack.c.l.b16 %v28
  %v237 = vunpack.c.l.b16 %v29
  %v238 = vunpack.c.l.b16 %v30
  %v239 = vunpack.c.l.b16 %v31
  %v240 = vunpack.c.l.b16 %v32
  %v241 = vunpack.c.l.b16 %v33
  %v242 = vunpack.c.l.b16 %v34
  %v243 = vunpack.c.l.b16 %v35
  %v244 = vunpack.c.l.b16 %v36
  %v245 = vunpack.c.l.b16 %v37
  %v246 = vunpack.c.l.b16 %v38
  %v247 = vunpack.c.l.b16 %v39
  %v248 = vunpack.c.l.b16 %v40
  %v249 = vunpack.c.l.b16 %v41
  %v250 = vunpack.c.l.b16 %v42
  %v251 = vunpack.c.l.b16 %v43
  %v252 = vunpack.c.l.b16 %v44
  %v253 = vunpack.c.l.b16 %v45
  %v254 = vunpack.c.l.b16 %v46
  %v255 = vunpack.c.l.b16 %v47
  %v256 = vunpack.c.l.b16 %v48
  %v257 = vunpack.c.l.b16 %v49
  %v258 = vunpack.c.l.b16 %v50
  %v259 = vunpack.c.l.b16 %v51
  %v260 = vunpack.c.l.b16 %v52
  %v261 = vunpack.c.l.b16 %v53
  %v262 = vunpack.c.l.b16 %v54
  %v263 = vunpack.c.l.b16 %v55
  %v264 = vunpack.c.l.b16 %v56
  %v265 = vunpack.c.l.b16 %v57
  %v266 = vunpack.c.l.b16 %v58
  %v267 = vunpack.c.l.b16 %v59
  %v268 = vunpack.c.l.b16 %v60
  %v269 = vunpack.c.l.b16 %v61
  %v270 = vunpack.c.l.b16 %v62
  %v271 = vunpack.c.l.b16 %v63
  %v272 = vunpack.c.l.b16 %v64
  %v273 = vunpack.c.l.b16 %v65
  %v274 = vunpack.c.l.b16 %v66
  %v275 = vunpack.c.l.b16 %v67
  %v276 = vunpack.c.l.b16 %v68
  %v277 = vunpack.c.l.b16 %v69
  %v278 = vunpack.c.l.b16 %v70
  %v279 = vunpack.c.l.b16 %v71
  %v280 = vunpack.c.l.b16 %v72
  %v281 = vunpack.c.l.b16 %v73
  %v282 = vunpack.c.l.b16 %v74
  %v283 = vunpack.c.l.b16 %v75
  %v284 = vunpack.c.l.b16 %v76
  %v285 = vunpack.c.l.b16 %v77
  %v286 = vunpack.c.l.b16 %v78
  %v287 = vunpack.c.l.b16 %v79
  %v288 = vunpack.c.l.b16 %v80
  %v289 = vunpack.c.l.b16 %v81
  %v290 = vunpack.c.l.b16 %v82
  %v291 = vunpack.c.l.b16 %v83
  %v292 = vunpack.c.l.b16 %v84
  %v293 = vunpack.c.l.b16 %v85
  %v294 = vunpack.c.l.b16 %v86
  %v295 = vunpack.c.l.b16 %v87
  %v296 = vunpack.c.l.b16 %v88
  %v297 = vunpack.c.l.b16 %v89
  %v298 = vunpack.c.l.b16 %v90
  %v299 = vunpack.c.l.b16 %v91
  %v300 = vpack.c.b16 %v237, %v236
  %v301 = vpack.c.b16 %v239, %v238
  %v302 = vpack.c.b16 %v241, %v240
  %v303 = vpack.c.b16 %v243, %v242
  %v304 = vpack.c.b16 %v245, %v244
  %v305 = vpack.c.b16 %v247, %v246
  %v306 = vpack.c.b16 %v249, %v248
  %v307 = vpack.c.b16 %v251, %v250
  %v308 = vpack.c.b16 %v253, %v252
  %v309 = vpack.c.b16 %v255, %v254
  %v310 = vpack.c.b16 %v257, %v256
  %v311 = vpack.c.b16 %v259, %v258
  %v312 = vpack.c.b16 %v261, %v260
  %v313 = vpack.c.b16 %v263, %v262
  %v314 = vpack.c.b16 %v265, %v264
  %v315 = vpack.c.b16 %v267, %v266
  %v316 = vpack.c.b16 %v269, %v268
  %v317 = vpack.c.b16 %v271, %v270
  %v318 = vpack.c.b16 %v273, %v272
  %v319 = vpack.c.b16 %v275, %v274
  %v320 = vpack.c.b16 %v277, %v276
  %v321 = vpack.c.b16 %v279, %v278
  %v322 = vpack.c.b16 %v281, %v280
  %v323 = vpack.c.b16 %v283, %v282
  %v324 = vpack.c.b16 %v285, %v284
  %v325 = vpack.c.b16 %v287, %v286
  %v326 = vpack.c.b16 %v289, %v288
  %v327 = vpack.c.b16 %v291, %v290
  %v328 = vpack.c.b16 %v293, %v292
  %v329 = vpack.c.b16 %v295, %v294
  %v330 = vpack.c.b16 %v297, %v296
  %v331 = vpack.c.b16 %v299, %v298
  %364 = vmatprep.subr.bf16.mxu0 0
  %365 = vmatpush1.bf16.msra.mxu0 %v307
  %366 = vmatprep.subr.bf16.mxu0 0
  %367 = vmatpush1.bf16.msra.mxu0 %v306
  %368 = vmatprep.subr.bf16.mxu0 0
  %369 = vmatpush1.bf16.msra.mxu0 %v305
  %370 = vmatprep.subr.bf16.mxu0 0
  %371 = vmatpush1.bf16.msra.mxu0 %v304
  %372 = vmatprep.subr.bf16.mxu0 0
  %373 = vmatpush1.bf16.msra.mxu0 %v303
  %374 = vmatprep.subr.bf16.mxu0 0
  %375 = vmatpush1.bf16.msra.mxu0 %v302
  %376 = vmatprep.subr.bf16.mxu0 0
  %377 = vmatpush1.bf16.msra.mxu0 %v301
  %378 = vmatprep.subr.bf16.mxu0 0
  %379 = vmatpush1.bf16.msra.mxu0 %v300
  %380 = vmatprep.subr.bf16.mxu0 0
  %381 = vmatpush2.bf16.msra.mxu0 %v315
  %382 = vmatprep.subr.bf16.mxu0 0
  %383 = vmatpush2.bf16.msra.mxu0 %v314
  %384 = vmatprep.subr.bf16.mxu0 0
  %385 = vmatpush2.bf16.msra.mxu0 %v313
  %386 = vmatprep.subr.bf16.mxu0 0
  %387 = vmatpush2.bf16.msra.mxu0 %v312
  %388 = vmatprep.subr.bf16.mxu0 0
  %389 = vmatpush2.bf16.msra.mxu0 %v311
  %390 = vmatprep.subr.bf16.mxu0 0
  %391 = vmatpush2.bf16.msra.mxu0 %v310
  %392 = vmatprep.subr.bf16.mxu0 0
  %393 = vmatpush2.bf16.msra.mxu0 %v309
  %394 = vmatprep.subr.bf16.mxu0 0
  %395 = vmatpush2.bf16.msra.mxu0 %v308
  %396 = vmatprep.mubr.bf16.mxu0 %v141
  %397 = vmatmul.mubr.bf16.gmra.mxu0 %v140
  %v398 = vpop.f32.mrf.mxu0
  %v399 = vadd.f32 0.0, %v398
  %v400 = vpop.f32.mrf.mxu0
  %v401 = vpop.f32.mrf.mxu0
  %v402 = vadd.f32 0.0, %v401
  %v403 = vpop.f32.mrf.mxu0
  %404 = vmatprep.mubr.bf16.mxu0 %v145
  %405 = vmatmul.mubr.bf16.gmra.mxu0 %v144
  %v406 = vpop.f32.mrf.mxu0
  %v407 = vadd.f32 0.0, %v406
  %v408 = vpop.f32.mrf.mxu0
  %v409 = vpop.f32.mrf.mxu0
  %v410 = vadd.f32 0.0, %v409
  %v411 = vpop.f32.mrf.mxu0
  %412 = vmatprep.mubr.bf16.mxu0 %v149
  %413 = vmatmul.mubr.bf16.gmra.mxu0 %v148
  %v414 = vpop.f32.mrf.mxu0
  %v415 = vadd.f32 0.0, %v414
  %v416 = vpop.f32.mrf.mxu0
  %v417 = vpop.f32.mrf.mxu0
  %v418 = vadd.f32 0.0, %v417
  %v419 = vpop.f32.mrf.mxu0
  %420 = vmatprep.mubr.bf16.mxu0 %v153
  %421 = vmatmul.mubr.bf16.gmra.mxu0 %v152
  %v422 = vpop.f32.mrf.mxu0
  %v423 = vadd.f32 0.0, %v422
  %v424 = vpop.f32.mrf.mxu0
  %v425 = vpop.f32.mrf.mxu0
  %v426 = vadd.f32 0.0, %v425
  %v427 = vpop.f32.mrf.mxu0
  %428 = vdwg.mxu0
  %429 = vmatprep.subr.bf16.mxu0 0
  %430 = vmatpush1.bf16.msra.mxu0 %v323
  %431 = vmatprep.subr.bf16.mxu0 0
  %432 = vmatpush1.bf16.msra.mxu0 %v322
  %433 = vmatprep.subr.bf16.mxu0 0
  %434 = vmatpush1.bf16.msra.mxu0 %v321
  %435 = vmatprep.subr.bf16.mxu0 0
  %436 = vmatpush1.bf16.msra.mxu0 %v320
  %437 = vmatprep.subr.bf16.mxu0 0
  %438 = vmatpush1.bf16.msra.mxu0 %v319
  %439 = vmatprep.subr.bf16.mxu0 0
  %440 = vmatpush1.bf16.msra.mxu0 %v318
  %441 = vmatprep.subr.bf16.mxu0 0
  %442 = vmatpush1.bf16.msra.mxu0 %v317
  %443 = vmatprep.subr.bf16.mxu0 0
  %444 = vmatpush1.bf16.msra.mxu0 %v316
  %445 = vmatprep.subr.bf16.mxu0 0
  %446 = vmatpush2.bf16.msra.mxu0 %v331
  %447 = vmatprep.subr.bf16.mxu0 0
  %448 = vmatpush2.bf16.msra.mxu0 %v330
  %449 = vmatprep.subr.bf16.mxu0 0
  %450 = vmatpush2.bf16.msra.mxu0 %v329
  %451 = vmatprep.subr.bf16.mxu0 0
  %452 = vmatpush2.bf16.msra.mxu0 %v328
  %453 = vmatprep.subr.bf16.mxu0 0
  %454 = vmatpush2.bf16.msra.mxu0 %v327
  %455 = vmatprep.subr.bf16.mxu0 0
  %456 = vmatpush2.bf16.msra.mxu0 %v326
  %457 = vmatprep.subr.bf16.mxu0 0
  %458 = vmatpush2.bf16.msra.mxu0 %v325
  %459 = vmatprep.subr.bf16.mxu0 0
  %460 = vmatpush2.bf16.msra.mxu0 %v324
  %461 = vmatprep.mubr.bf16.mxu0 %v143
  %462 = vmatmul.mubr.bf16.gmra.mxu0 %v142
  %v463 = vpop.f32.mrf.mxu0
  %v464 = vadd.f32 %v399, %v463
  %v465 = vpop.f32.mrf.mxu0
  %v466 = vpop.f32.mrf.mxu0
  %v467 = vadd.f32 %v402, %v466
  %v468 = vpop.f32.mrf.mxu0
  %469 = vmatprep.mubr.bf16.mxu0 %v147
  %470 = vmatmul.mubr.bf16.gmra.mxu0 %v146
  %v471 = vpop.f32.mrf.mxu0
  %v472 = vadd.f32 %v407, %v471
  %v473 = vpop.f32.mrf.mxu0
  %v474 = vpop.f32.mrf.mxu0
  %v475 = vadd.f32 %v410, %v474
  %v476 = vpop.f32.mrf.mxu0
  %477 = vmatprep.mubr.bf16.mxu0 %v151
  %478 = vmatmul.mubr.bf16.gmra.mxu0 %v150
  %v479 = vpop.f32.mrf.mxu0
  %v480 = vadd.f32 %v415, %v479
  %v481 = vpop.f32.mrf.mxu0
  %v482 = vpop.f32.mrf.mxu0
  %v483 = vadd.f32 %v418, %v482
  %v484 = vpop.f32.mrf.mxu0
  %485 = vmatprep.mubr.bf16.mxu0 %v155
  %486 = vmatmul.mubr.bf16.gmra.mxu0 %v154
  %v487 = vpop.f32.mrf.mxu0
  %v488 = vadd.f32 %v423, %v487
  %v489 = vpop.f32.mrf.mxu0
  %v490 = vpop.f32.mrf.mxu0
  %v491 = vadd.f32 %v426, %v490
  %v492 = vpop.f32.mrf.mxu0
  %493 = vdwg.mxu0
  %v494 = vand.u32 2147483647, %v464
  %v495 = vand.u32 2147483647, %v467
  %v496 = vand.u32 2147483647, %v472
  %v497 = vand.u32 2147483647, %v475
  %v498 = vand.u32 2147483647, %v480
  %v499 = vand.u32 2147483647, %v483
  %v500 = vand.u32 2147483647, %v488
  %v501 = vand.u32 2147483647, %v491
  %v502 = vadd.f32 %v494, 1e-05
  %v503 = vadd.f32 %v495, 1e-05
  %v504 = vadd.f32 %v496, 1e-05
  %v505 = vadd.f32 %v497, 1e-05
  %v506 = vadd.f32 %v498, 1e-05
  %v507 = vadd.f32 %v499, 1e-05
  %v508 = vadd.f32 %v500, 1e-05
  %v509 = vadd.f32 %v501, 1e-05
  %v510 = vlog2.pop %v502
  %v511 = vmul.f32 %v510, 0.6931472
  %v512 = vlog2.pop %v503
  %v513 = vmul.f32 %v512, 0.6931472
  %v514 = vlog2.pop %v504
  %v515 = vmul.f32 %v514, 0.6931472
  %v516 = vlog2.pop %v505
  %v517 = vmul.f32 %v516, 0.6931472
  %v518 = vlog2.pop %v506
  %v519 = vmul.f32 %v518, 0.6931472
  %v520 = vlog2.pop %v507
  %v521 = vmul.f32 %v520, 0.6931472
  %v522 = vlog2.pop %v508
  %v523 = vmul.f32 %v522, 0.6931472
  %v524 = vlog2.pop %v509
  %v525 = vmul.f32 %v524, 0.6931472
  %v526 = vmul.f32 %v511, 0.14285715
  %v527 = vmul.f32 %v513, 0.14285715
  %v528 = vmul.f32 %v515, 0.14285715
  %v529 = vmul.f32 %v517, 0.14285715
  %v530 = vmul.f32 %v519, 0.14285715
  %v531 = vmul.f32 %v521, 0.14285715
  %v532 = vmul.f32 %v523, 0.14285715
  %v533 = vmul.f32 %v525, 0.14285715
  %v534 = vadd.f32 %v526, 0.5714286
  %v535 = vadd.f32 %v527, 0.5714286
  %v536 = vadd.f32 %v528, 0.5714286
  %v537 = vadd.f32 %v529, 0.5714286
  %v538 = vadd.f32 %v530, 0.5714286
  %v539 = vadd.f32 %v531, 0.5714286
  %v540 = vadd.f32 %v532, 0.5714286
  %v541 = vadd.f32 %v533, 0.5714286
  %vm542 = vcmask 130048
  %543 = vst.msk [vmem:[%s2] sm:$0xff] %vm542, %v534
  %544 = vst.msk [vmem:[%s2 + $0x8] sm:$0xff] %vm542, %v535
  %545 = vst.msk [vmem:[%s2 + $0x10] sm:$0xff] %vm542, %v536
  %546 = vst.msk [vmem:[%s2 + $0x18] sm:$0xff] %vm542, %v537
  %547 = vst.msk [vmem:[%s2 + $0x20] sm:$0xff] %vm542, %v538
  %548 = vst.msk [vmem:[%s2 + $0x28] sm:$0xff] %vm542, %v539
  %549 = vst.msk [vmem:[%s2 + $0x30] sm:$0xff] %vm542, %v540
  %550 = vst.msk [vmem:[%s2 + $0x38] sm:$0xff] %vm542, %v541
  // Predicated region
  $region10: #{tpu_custom_call.1} parent=0 // pred_check
    _
  $region11: #{tpu_custom_call.1} parent=0 // pred_check_branch
    %552 = sbr.rel (0) target = $region13
  $region12: #{tpu_custom_call.1} parent=0 // pred_region
    _
  $region13: #{tpu_custom_call.1} parent=0 // pred_fallthru
    _
  // Predicated region
  $region14: #{tpu_custom_call.1} parent=0 // pred_check
    _
  $region15: #{tpu_custom_call.1} parent=0 // pred_check_branch
    %554 = sbr.rel (0) target = $region17
  $region16: #{tpu_custom_call.1} parent=0 // pred_region
    _
  $region17: #{tpu_custom_call.1} parent=0 // pred_fallthru
    _

</llo_original>
